<compile_context>
chip_gen: v7x
topology: tpu7x:2x2x1
jax: 0.10.0
libtpu: 0.0.40
codegen_flags: <defaults>
</compile_context>

<pallas_src>
import functools

import jax
import jax.numpy as jnp
from jax.experimental import pallas as pl
from jax.experimental.pallas import tpu as pltpu

# OGB bond feature vocabulary sizes (get_bond_feature_dims()).
FULL_BOND_FEATURE_DIMS = [5, 6, 2]


def _round_up(x, m):
    return ((x + m - 1) // m) * m


def _bond_encoder_kernel(idx_ref, table_ref, out_ref, *,
                         group, n_feat, k_blk, offsets):
    """idx_ref:   [tile_g, group*n_feat] int32 raw categorical features;
                  column r*n_feat + f holds feature f of bond (group*row + r).
       table_ref: [group*k_blk, lane_h] packed block-diagonal table (bf16).
       out_ref:   [tile_g, lane_h] f32; lanes [r*H,(r+1)*H) = embedding of
                  bond (group*row + r)."""
    idx = idx_ref[...]                                   # [tile_g, group*n_feat]
    tile_g = idx.shape[0]
    c_dim = group * k_blk                                # lane-clean (x128)
    iota_c = jax.lax.broadcasted_iota(jnp.int32, (tile_g, c_dim), 1)

    # Per-feature vocab offsets and per-slab bases are compile-time constants,
    # so every compare target is (loaded column + immediate).  All (slab,
    # feature) categories land in disjoint rows of the packed vocabulary, so
    # OR of the boolean hits equals the 0/1 multi-hot sum exactly.
    hit = None
    for r in range(group):                               # static, small
        for f in range(n_feat):
            tgt = idx[:, r * n_feat + f][:, None] + (r * k_blk + offsets[f])
            h = iota_c == tgt
            hit = h if hit is None else jnp.logical_or(hit, h)

    # bool -> f32 -> matmul dtype (two cheap VPU casts; always lowers cleanly).
    multihot = hit.astype(jnp.float32).astype(table_ref.dtype)
    # sum_f Embedding_f(x[:, f])  ==  multihot @ packed_block_diag_table
    # TODO(synk): if VALU compares ever bind on v7x, redo them in int8.
    out_ref[...] = jnp.dot(multihot, table_ref[...],
                           preferred_element_type=jnp.float32)


def build_params(hidden_size, key, *, mm_dtype=jnp.bfloat16):
    """Matches BondEncoder.__init__: per-feature Embedding(dim, hidden) with
    Xavier-uniform init and the max_norm=1 constraint (rows renormed to L2
    norm <= 1, applied eagerly -- forward-equivalent to the lazy renorm).

    Also builds (once, off the hot path) the packed block-diagonal table the
    kernel consumes, in the matmul dtype."""
    h = hidden_size
    tables = []
    for dim in FULL_BOND_FEATURE_DIMS:
        key, sub = jax.random.split(key)
        # xavier_uniform_ on weight [dim, hidden]: bound = sqrt(6/(dim+hidden))
        bound = (6.0 / (dim + h)) ** 0.5
        w = jax.random.uniform(sub, (dim, h), jnp.float32,
                               minval=-bound, maxval=bound)
        norms = jnp.linalg.norm(w, axis=1, keepdims=True)
        scale = jnp.where(norms > 1.0, 1.0 / (norms + 1e-7), 1.0)
        tables.append(w * scale)

    table_f32 = jnp.concatenate(tables, axis=0)          # [total_vocab, H]
    total = table_f32.shape[0]

    # Pack `group` bonds per output row so the HBM writeback is lane-dense
    # (H=32 -> group=4 -> 128 lanes, unmasked vst).
    group = (128 // h) if (h < 128 and 128 % h == 0) else 1
    lane_h = _round_up(group * h, 128)
    # Tight per-slab vocab padding; group*k_blk is always a multiple of 128.
    k_blk = _round_up(total, 128 // group)

    # Block-diagonal packed table: slab r maps vocab rows
    # [r*k_blk, r*k_blk + total) to lanes [r*H, (r+1)*H); padded rows are zero
    # and are never hit.
    table_bd = jnp.zeros((group * k_blk, lane_h), jnp.float32)
    for r in range(group):
        table_bd = table_bd.at[r * k_blk:r * k_blk + total,
                               r * h:(r + 1) * h].set(table_f32)
    table_bd = table_bd.astype(mm_dtype)

    offsets, acc = [], 0
    for dim in FULL_BOND_FEATURE_DIMS:                    # static python ints
        offsets.append(acc)
        acc += dim

    return dict(table_bd=table_bd, table_f32=table_f32, offsets=tuple(offsets),
                hidden=h, group=group, k_blk=k_blk, lane_h=lane_h)


def bond_encoder_forward(edge_attr, params, *, tile_n=8192):
    """edge_attr: [N, F] int32 categorical bond features.
       Returns [N, hidden] float32 summed embeddings."""
    h = params["hidden"]
    group = params["group"]
    k_blk = params["k_blk"]
    lane_h = params["lane_h"]
    table_bd = params["table_bd"]
    offsets = params["offsets"]

    n, n_feat = edge_attr.shape
    if n == 0:                                            # empty-graph guard
        return jnp.zeros((0, h), jnp.float32)

    # tile_g = tile_n // group must be a multiple of 16 (bf16 sublane packing
    # for the multi-hot intermediate) and 8 (int32/f32 tiles).
    align = 16 * group
    tile_n = max(align, min(tile_n, _round_up(n, align)))
    tile_n = _round_up(tile_n, align)
    # Keep >= 2 grid steps whenever the workload allows so v7x's two
    # TensorCores both get work ("parallel" grid axis); harmless elsewhere.
    half = _round_up((n + 1) // 2, align)
    tile_n = min(tile_n, max(align, half))
    n_pad = _round_up(n, tile_n)
    tile_g = tile_n // group

    # Raw categories go straight to the kernel (offset add is fused in-kernel;
    # no x_global materialization).  Padded rows use category 0 (valid); their
    # outputs are sliced off below.
    edge_pad = jnp.pad(edge_attr.astype(jnp.int32), ((0, n_pad - n), (0, 0)))
    idx_grouped = edge_pad.reshape(n_pad // group, group * n_feat)

    kernel = functools.partial(_bond_encoder_kernel, group=group,
                               n_feat=n_feat, k_blk=k_blk, offsets=offsets)

    out = pl.pallas_call(
        kernel,
        out_shape=jax.ShapeDtypeStruct((n_pad // group, lane_h), jnp.float32),
        grid_spec=pltpu.PrefetchScalarGridSpec(
            num_scalar_prefetch=0,
            grid=(n_pad // tile_n,),
            in_specs=[
                # indices tile (lane-sparse but tiny vs. the 128 B/bond output)
                pl.BlockSpec((tile_g, group * n_feat), lambda i: (i, 0)),
                # packed table, constant block index -> stays resident in VMEM
                pl.BlockSpec((group * k_blk, lane_h), lambda i: (0, 0)),
            ],
            out_specs=pl.BlockSpec((tile_g, lane_h), lambda i: (i, 0)),
        ),
        compiler_params=pltpu.CompilerParams(
            dimension_semantics=("parallel",),
            vmem_limit_bytes=32 * 1024 * 1024),
    )(idx_grouped, table_bd)

    # Undo the lane packing and drop the padded rows.
    return out[:, :group * h].reshape(n_pad, h)[:n]


def reference_forward(edge_attr, table_f32, offsets):
    """Plain-JAX reference: sum of per-feature embedding lookups."""
    off = jnp.asarray(offsets, jnp.int32)
    x_global = edge_attr + off[None, :]
    return jnp.sum(table_f32[x_global], axis=1)


if __name__ == "__main__":
    key = jax.random.PRNGKey(0)
    hidden_size = 32
    num_bonds = 300                      # small; exercises pad + >=2 grid steps
    num_features = len(FULL_BOND_FEATURE_DIMS)

    key, pkey = jax.random.split(key)
    params = build_params(hidden_size, pkey)

    # Deterministic categorical bond features, each in [0, dim_i).
    cols = []
    for dim in FULL_BOND_FEATURE_DIMS:
        key, sub = jax.random.split(key)
        cols.append(jax.random.randint(sub, (num_bonds, 1), 0, dim, jnp.int32))
    edge_attr = jnp.concatenate(cols, axis=1)            # [num_bonds, 3]

    out = bond_encoder_forward(edge_attr, params)
    out = jax.block_until_ready(out)
    assert out.shape == (num_bonds, hidden_size)

    # Tight check against a reference using the same bf16-rounded table
    # (validates the kernel's multi-hot/matmul math exactly).
    table_q = params["table_f32"].astype(params["table_bd"].dtype)
    table_q = table_q.astype(jnp.float32)
    ref_q = reference_forward(edge_attr, table_q, params["offsets"])
    assert jnp.allclose(out, ref_q, atol=1e-5, rtol=1e-5), "kernel-math mismatch"

    # Loose check against the full-f32 module reference (bf16 table rounding
    # contributes ~1e-3 relative error by design).
    ref_f32 = reference_forward(edge_attr, params["table_f32"], params["offsets"])
    assert jnp.allclose(out, ref_f32, atol=1e-2, rtol=1e-2), "mismatch vs f32 ref"

    print("KERNEL_OK")
</pallas_src>

<mosaic_0001>
module attributes {stable_mosaic.version = 11 : i64} {
  func.func @_bond_encoder_kernel(%arg0: i32, %arg1: memref<48x12xi32, #tpu.memory_space<vmem>>, %arg2: memref<128x128xbf16, #tpu.memory_space<vmem>>, %arg3: memref<48x128xf32, #tpu.memory_space<vmem>>) attributes {dimension_semantics = [#tpu.dimension_semantics<parallel>], iteration_bounds = array<i64: 2>, scalar_prefetch = 0 : i64, scratch_operands = 0 : i64, tpu.core_type = #tpu.core_type<tc>, window_params = [{transform_indices = @transform_0, window_bounds = array<i64: 48, 12>}, {pipeline_mode = #tpu.pipeline_mode<synchronous>, transform_indices = @transform_1, window_bounds = array<i64: 128, 128>}, {transform_indices = @transform_2, window_bounds = array<i64: 48, 128>}]} {
    %c0 = arith.constant 0 : index
    %c0_0 = arith.constant 0 : index
    %0 = vector.load %arg1[%c0, %c0_0] : memref<48x12xi32, #tpu.memory_space<vmem>>, vector<48x12xi32>
    %1 = tpu.iota {dimensions = array<i32: 1>} : vector<48x128xi32>
    %2 = vector.extract_strided_slice %0 {offsets = [0, 0], sizes = [48, 1], strides = [1, 1]} : vector<48x12xi32> to vector<48x1xi32>
    %3 = vector.shape_cast %2 : vector<48x1xi32> to vector<48xi32>
    %4 = vector.shape_cast %3 : vector<48xi32> to vector<48x1xi32>
    %c0_i32 = arith.constant 0 : i32
    %5 = vector.broadcast %c0_i32 : i32 to vector<48x1xi32>
    %6 = arith.addi %4, %5 : vector<48x1xi32>
    %7 = vector.broadcast %6 : vector<48x1xi32> to vector<48x128xi32>
    %8 = arith.cmpi eq, %1, %7 : vector<48x128xi32>
    %9 = vector.extract_strided_slice %0 {offsets = [0, 1], sizes = [48, 1], strides = [1, 1]} : vector<48x12xi32> to vector<48x1xi32>
    %10 = vector.shape_cast %9 : vector<48x1xi32> to vector<48xi32>
    %11 = vector.shape_cast %10 : vector<48xi32> to vector<48x1xi32>
    %c5_i32 = arith.constant 5 : i32
    %12 = vector.broadcast %c5_i32 : i32 to vector<48x1xi32>
    %13 = arith.addi %11, %12 : vector<48x1xi32>
    %14 = vector.broadcast %13 : vector<48x1xi32> to vector<48x128xi32>
    %15 = arith.cmpi eq, %1, %14 : vector<48x128xi32>
    %16 = arith.ori %8, %15 : vector<48x128xi1>
    %17 = vector.extract_strided_slice %0 {offsets = [0, 2], sizes = [48, 1], strides = [1, 1]} : vector<48x12xi32> to vector<48x1xi32>
    %18 = vector.shape_cast %17 : vector<48x1xi32> to vector<48xi32>
    %19 = vector.shape_cast %18 : vector<48xi32> to vector<48x1xi32>
    %c11_i32 = arith.constant 11 : i32
    %20 = vector.broadcast %c11_i32 : i32 to vector<48x1xi32>
    %21 = arith.addi %19, %20 : vector<48x1xi32>
    %22 = vector.broadcast %21 : vector<48x1xi32> to vector<48x128xi32>
    %23 = arith.cmpi eq, %1, %22 : vector<48x128xi32>
    %24 = arith.ori %16, %23 : vector<48x128xi1>
    %25 = vector.extract_strided_slice %0 {offsets = [0, 3], sizes = [48, 1], strides = [1, 1]} : vector<48x12xi32> to vector<48x1xi32>
    %26 = vector.shape_cast %25 : vector<48x1xi32> to vector<48xi32>
    %27 = vector.shape_cast %26 : vector<48xi32> to vector<48x1xi32>
    %c32_i32 = arith.constant 32 : i32
    %28 = vector.broadcast %c32_i32 : i32 to vector<48x1xi32>
    %29 = arith.addi %27, %28 : vector<48x1xi32>
    %30 = vector.broadcast %29 : vector<48x1xi32> to vector<48x128xi32>
    %31 = arith.cmpi eq, %1, %30 : vector<48x128xi32>
    %32 = arith.ori %24, %31 : vector<48x128xi1>
    %33 = vector.extract_strided_slice %0 {offsets = [0, 4], sizes = [48, 1], strides = [1, 1]} : vector<48x12xi32> to vector<48x1xi32>
    %34 = vector.shape_cast %33 : vector<48x1xi32> to vector<48xi32>
    %35 = vector.shape_cast %34 : vector<48xi32> to vector<48x1xi32>
    %c37_i32 = arith.constant 37 : i32
    %36 = vector.broadcast %c37_i32 : i32 to vector<48x1xi32>
    %37 = arith.addi %35, %36 : vector<48x1xi32>
    %38 = vector.broadcast %37 : vector<48x1xi32> to vector<48x128xi32>
    %39 = arith.cmpi eq, %1, %38 : vector<48x128xi32>
    %40 = arith.ori %32, %39 : vector<48x128xi1>
    %41 = vector.extract_strided_slice %0 {offsets = [0, 5], sizes = [48, 1], strides = [1, 1]} : vector<48x12xi32> to vector<48x1xi32>
    %42 = vector.shape_cast %41 : vector<48x1xi32> to vector<48xi32>
    %43 = vector.shape_cast %42 : vector<48xi32> to vector<48x1xi32>
    %c43_i32 = arith.constant 43 : i32
    %44 = vector.broadcast %c43_i32 : i32 to vector<48x1xi32>
    %45 = arith.addi %43, %44 : vector<48x1xi32>
    %46 = vector.broadcast %45 : vector<48x1xi32> to vector<48x128xi32>
    %47 = arith.cmpi eq, %1, %46 : vector<48x128xi32>
    %48 = arith.ori %40, %47 : vector<48x128xi1>
    %49 = vector.extract_strided_slice %0 {offsets = [0, 6], sizes = [48, 1], strides = [1, 1]} : vector<48x12xi32> to vector<48x1xi32>
    %50 = vector.shape_cast %49 : vector<48x1xi32> to vector<48xi32>
    %51 = vector.shape_cast %50 : vector<48xi32> to vector<48x1xi32>
    %c64_i32 = arith.constant 64 : i32
    %52 = vector.broadcast %c64_i32 : i32 to vector<48x1xi32>
    %53 = arith.addi %51, %52 : vector<48x1xi32>
    %54 = vector.broadcast %53 : vector<48x1xi32> to vector<48x128xi32>
    %55 = arith.cmpi eq, %1, %54 : vector<48x128xi32>
    %56 = arith.ori %48, %55 : vector<48x128xi1>
    %57 = vector.extract_strided_slice %0 {offsets = [0, 7], sizes = [48, 1], strides = [1, 1]} : vector<48x12xi32> to vector<48x1xi32>
    %58 = vector.shape_cast %57 : vector<48x1xi32> to vector<48xi32>
    %59 = vector.shape_cast %58 : vector<48xi32> to vector<48x1xi32>
    %c69_i32 = arith.constant 69 : i32
    %60 = vector.broadcast %c69_i32 : i32 to vector<48x1xi32>
    %61 = arith.addi %59, %60 : vector<48x1xi32>
    %62 = vector.broadcast %61 : vector<48x1xi32> to vector<48x128xi32>
    %63 = arith.cmpi eq, %1, %62 : vector<48x128xi32>
    %64 = arith.ori %56, %63 : vector<48x128xi1>
    %65 = vector.extract_strided_slice %0 {offsets = [0, 8], sizes = [48, 1], strides = [1, 1]} : vector<48x12xi32> to vector<48x1xi32>
    %66 = vector.shape_cast %65 : vector<48x1xi32> to vector<48xi32>
    %67 = vector.shape_cast %66 : vector<48xi32> to vector<48x1xi32>
    %c75_i32 = arith.constant 75 : i32
    %68 = vector.broadcast %c75_i32 : i32 to vector<48x1xi32>
    %69 = arith.addi %67, %68 : vector<48x1xi32>
    %70 = vector.broadcast %69 : vector<48x1xi32> to vector<48x128xi32>
    %71 = arith.cmpi eq, %1, %70 : vector<48x128xi32>
    %72 = arith.ori %64, %71 : vector<48x128xi1>
    %73 = vector.extract_strided_slice %0 {offsets = [0, 9], sizes = [48, 1], strides = [1, 1]} : vector<48x12xi32> to vector<48x1xi32>
    %74 = vector.shape_cast %73 : vector<48x1xi32> to vector<48xi32>
    %75 = vector.shape_cast %74 : vector<48xi32> to vector<48x1xi32>
    %c96_i32 = arith.constant 96 : i32
    %76 = vector.broadcast %c96_i32 : i32 to vector<48x1xi32>
    %77 = arith.addi %75, %76 : vector<48x1xi32>
    %78 = vector.broadcast %77 : vector<48x1xi32> to vector<48x128xi32>
    %79 = arith.cmpi eq, %1, %78 : vector<48x128xi32>
    %80 = arith.ori %72, %79 : vector<48x128xi1>
    %81 = vector.extract_strided_slice %0 {offsets = [0, 10], sizes = [48, 1], strides = [1, 1]} : vector<48x12xi32> to vector<48x1xi32>
    %82 = vector.shape_cast %81 : vector<48x1xi32> to vector<48xi32>
    %83 = vector.shape_cast %82 : vector<48xi32> to vector<48x1xi32>
    %c101_i32 = arith.constant 101 : i32
    %84 = vector.broadcast %c101_i32 : i32 to vector<48x1xi32>
    %85 = arith.addi %83, %84 : vector<48x1xi32>
    %86 = vector.broadcast %85 : vector<48x1xi32> to vector<48x128xi32>
    %87 = arith.cmpi eq, %1, %86 : vector<48x128xi32>
    %88 = arith.ori %80, %87 : vector<48x128xi1>
    %89 = vector.extract_strided_slice %0 {offsets = [0, 11], sizes = [48, 1], strides = [1, 1]} : vector<48x12xi32> to vector<48x1xi32>
    %90 = vector.shape_cast %89 : vector<48x1xi32> to vector<48xi32>
    %91 = vector.shape_cast %90 : vector<48xi32> to vector<48x1xi32>
    %c107_i32 = arith.constant 107 : i32
    %92 = vector.broadcast %c107_i32 : i32 to vector<48x1xi32>
    %93 = arith.addi %91, %92 : vector<48x1xi32>
    %94 = vector.broadcast %93 : vector<48x1xi32> to vector<48x128xi32>
    %95 = arith.cmpi eq, %1, %94 : vector<48x128xi32>
    %96 = arith.ori %88, %95 : vector<48x128xi1>
    %97 = arith.extui %96 : vector<48x128xi1> to vector<48x128xi32>
    %98 = arith.sitofp %97 : vector<48x128xi32> to vector<48x128xf32>
    %99 = arith.truncf %98 : vector<48x128xf32> to vector<48x128xbf16>
    %c0_1 = arith.constant 0 : index
    %c0_2 = arith.constant 0 : index
    %100 = vector.load %arg2[%c0_1, %c0_2] : memref<128x128xbf16, #tpu.memory_space<vmem>>, vector<128x128xbf16>
    %cst = arith.constant dense<0.000000e+00> : vector<48x128xf32>
    %101 = tpu.matmul %99, %100, %cst {dimension_numbers = #tpu.dot_dimension_numbers<[1], [0], [0], [1], [0, 0, 1, 1], [], []>} : vector<48x128xbf16>, vector<128x128xbf16>, vector<48x128xf32> -> vector<48x128xf32>
    %c0_3 = arith.constant 0 : index
    %c0_4 = arith.constant 0 : index
    %102 = vector.load %arg3[%c0_3, %c0_4] : memref<48x128xf32, #tpu.memory_space<vmem>>, vector<48x128xf32>
    tpu.vector_store %arg3[%c0_3, %c0_4], %101 {strides = array<i32>} : memref<48x128xf32, #tpu.memory_space<vmem>>, vector<48x128xf32>,
    return
  }
  func.func @transform_0(%arg0: i32) -> (i32, i32) {
    %c0_i32 = arith.constant 0 : i32
    %c0_i32_0 = arith.constant 0 : i32
    return %arg0, %c0_i32 : i32, i32
  }
  func.func @transform_1(%arg0: i32) -> (i32, i32) {
    %c0_i32 = arith.constant 0 : i32
    %c0_i32_0 = arith.constant 0 : i32
    %c0_i32_1 = arith.constant 0 : i32
    return %c0_i32, %c0_i32_0 : i32, i32
  }
  func.func @transform_2(%arg0: i32) -> (i32, i32) {
    %c0_i32 = arith.constant 0 : i32
    %c0_i32_0 = arith.constant 0 : i32
    return %arg0, %c0_i32 : i32, i32
  }
}

</mosaic_0001>

<llo_original>
// kernel: tpu_custom_call.1
$region0: #{tpu_custom_call.1}
  #allocation0 [shape = 'u32[]', space=smem, size = 0x4, offset = 0x4, fixed_abs, tag = 'smem constant byte address 0x4 - core index']
  #allocation1 [shape = 'u32[144,128]{1,0:T(1,128)}', space=vmem, size = 0x12000, scoped, tag = 'internal scratch']
  %s0 = inlined_call_operand.vmem [shape: s32[96,12], index: 0, kind: input, shape index: {}]
  %s1 = inlined_call_operand.vmem [shape: bf16[128,128], index: 1, kind: input, shape index: {}]
  %s2 = inlined_call_operand.hbm [shape: f32[96,128], index: 2, kind: output, shape index: {}]
  %s3 = sld [smem:[#allocation0]]
  $region41: #{tpu_custom_call.1} parent=0
    _
  %s5 = ssub.s32 1, %s3
  %s6 = scalar_select 0, %s5, %s3
  $region1: #{tpu_custom_call.1} parent=0
    #allocation2 [shape = 'u8[49152]{0}', space=vmem, size = 0xc000, scoped, tag = 'output window, operand 0']
    #allocation3 [shape = 's32[2]{0}', space=sflag, size = 0x8, scoped, tag = 'scoped memory for tpu_custom_call.1']
    %7 = vsyncpa [#allocation3], 0
    %s8 = scalar_lea.sflag [#allocation3], 1
    %9 = vsyncpa %s8, 0
    loop: start=0, step=1, limit=4
    $region2: #{tpu_custom_call.1} parent=1 // loop_pre_header
      _
    $region3: #{tpu_custom_call.1} parent=1 // loop_header
      %s11 = sphi 0, %s15
      %p12 = scmp.ge.s32.totalorder %s11, 4
      %s21 = sphi 0, %s23
      %s24 = sphi 0, %s21
      %s25 = sphi 0, %s24
      %s41 = sphi 0, %s25
      %s45 = sphi 0, %s45
      %s47 = sphi 0, %s45
      %s48 = sphi 0, %s47
      %s62 = sphi 0, %s48
      %s68 = sphi 0, %s70
      %s71 = sphi 0, %s68
      %s72 = sphi 0, %s71
      %s88 = sphi 0, %s72
    $region4: #{tpu_custom_call.1} parent=1 // loop_header_branch
      %14 = sbr.rel (%p12) target = $region8
    $region5: #{tpu_custom_call.1} parent=1 // loop_body
      %s16 = ssub.s32 %s11, 1
      %s17 = ssub.s32 %s11, 2
      %s18 = sadd.s32 %s11, 1
      %s19 = ssub.s32 %s11, %s18
      %p20 = scmp.eq.s32.totalorder %s19, 0
      %s22 = sadd.s32 %s21, 1
      %s23 = scalar_select %p20, %s21, %s22
      %p26 = pneg %p20
      %p27 = scmp.eq.s32.totalorder %s11, 1
      %p28 = por %p26, %p27
      %p29 = scmp.ne.s32.totalorder %s21, %s24
      %p30 = scmp.eq.s32.totalorder %s11, 0
      %p31 = por %p29, %p30
      %p32 = scmp.ne.s32.totalorder %s21, %s24
      %p33 = scmp.eq.s32.totalorder %s16, 1
      %p34 = por %p32, %p33
      %p35 = scmp.ne.s32.totalorder %s24, %s25
      %p36 = scmp.eq.s32.totalorder %s16, 0
      %p37 = por %p35, %p36
      %p38 = scmp.ne.s32.totalorder %s24, %s25
      %p39 = scmp.eq.s32.totalorder %s17, 1
      %p40 = por %p38, %p39
      %p42 = scmp.ne.s32.totalorder %s25, %s41
      %p43 = scmp.eq.s32.totalorder %s17, 0
      %p44 = por %p42, %p43
      %s46 = sadd.s32 %s45, 1
      %p49 = scmp.eq.s32.totalorder %s11, 1
      %p50 = scmp.ne.s32.totalorder %s45, %s47
      %p51 = scmp.eq.s32.totalorder %s11, 0
      %p52 = por %p50, %p51
      %p53 = scmp.ne.s32.totalorder %s45, %s47
      %p54 = scmp.eq.s32.totalorder %s16, 1
      %p55 = por %p53, %p54
      %p56 = scmp.ne.s32.totalorder %s47, %s48
      %p57 = scmp.eq.s32.totalorder %s16, 0
      %p58 = por %p56, %p57
      %p59 = scmp.ne.s32.totalorder %s47, %s48
      %p60 = scmp.eq.s32.totalorder %s17, 1
      %p61 = por %p59, %p60
      %p63 = scmp.ne.s32.totalorder %s48, %s62
      %p64 = scmp.eq.s32.totalorder %s17, 0
      %p65 = por %p63, %p64
      %s66 = ssub.s32 %s11, %s18
      %p67 = scmp.eq.s32.totalorder %s66, 0
      %s69 = sadd.s32 %s68, 1
      %s70 = scalar_select %p67, %s68, %s69
      %p73 = pneg %p67
      %p74 = scmp.eq.s32.totalorder %s11, 1
      %p75 = por %p73, %p74
      %p76 = scmp.ne.s32.totalorder %s68, %s71
      %p77 = scmp.eq.s32.totalorder %s11, 0
      %p78 = por %p76, %p77
      %p79 = scmp.ne.s32.totalorder %s68, %s71
      %p80 = scmp.eq.s32.totalorder %s16, 1
      %p81 = por %p79, %p80
      %p82 = scmp.ne.s32.totalorder %s71, %s72
      %p83 = scmp.eq.s32.totalorder %s16, 0
      %p84 = por %p82, %p83
      %p85 = scmp.ne.s32.totalorder %s71, %s72
      %p86 = scmp.eq.s32.totalorder %s17, 1
      %p87 = por %p85, %p86
      %p89 = scmp.ne.s32.totalorder %s72, %s88
      %p90 = scmp.eq.s32.totalorder %s17, 0
      %p91 = por %p89, %p90
      %p92 = scmp.le.s32.totalorder 1, %s11
      %p93 = scmp.lt.s32.totalorder %s11, 3
      %p94 = pnand %p92, %p93
      %p95 = pneg %p94
      // Predicated region
      $region9: #{tpu_custom_call.1} parent=5 // pred_check
        _
      $region10: #{tpu_custom_call.1} parent=5 // pred_check_branch
        %97 = sbr.rel (%p94) target = $region12
      $region11: #{tpu_custom_call.1} parent=5 // pred_region
        %s98 = ssub.s32 %s11, 1
        // Predicated region
        $region13: #{tpu_custom_call.1} parent=11 // pred_check
          %p99 = pneg %p58
        $region14: #{tpu_custom_call.1} parent=11 // pred_check_branch
          %101 = sbr.rel (%p99) target = $region16
        $region15: #{tpu_custom_call.1} parent=11 // pred_region
          _
        $region16: #{tpu_custom_call.1} parent=11 // pred_fallthru
          _
      $region12: #{tpu_custom_call.1} parent=5 // pred_fallthru
        _
      %p102 = scmp.lt.s32.totalorder %s11, 2
      // Predicated region
      $region17: #{tpu_custom_call.1} parent=5 // pred_check
        %p103 = pneg %p102
      $region18: #{tpu_custom_call.1} parent=5 // pred_check_branch
        %105 = sbr.rel (%p103) target = $region20
      $region19: #{tpu_custom_call.1} parent=5 // pred_region
        // Predicated region
        $region21: #{tpu_custom_call.1} parent=19 // pred_check
          %p106 = pneg %p31
        $region22: #{tpu_custom_call.1} parent=19 // pred_check_branch
          %108 = sbr.rel (%p106) target = $region24
        $region23: #{tpu_custom_call.1} parent=19 // pred_region
          %s109 = smul.u32 6, %s11
          %p110 = scmp.lt.s32.totalorder %s109, 11
          %s111 = scalar_select %p110, %s109, 11
          %s112 = smul.addr %s111, 8
          %s113 = scalar_lea.vmem %s0, %s112
          %s114 = smul.u32 6, %s11
        $region24: #{tpu_custom_call.1} parent=19 // pred_fallthru
          _
      $region20: #{tpu_custom_call.1} parent=5 // pred_fallthru
        _
      %p115 = scmp.le.s32.totalorder 1, %s11
      %p116 = scmp.lt.s32.totalorder %s11, 3
      %p117 = pnand %p115, %p116
      %p118 = pneg %p117
      // Predicated region
      $region25: #{tpu_custom_call.1} parent=5 // pred_check
        _
      $region26: #{tpu_custom_call.1} parent=5 // pred_check_branch
        %120 = sbr.rel (%p117) target = $region28
      $region27: #{tpu_custom_call.1} parent=5 // pred_region
        %s121 = ssub.s32 %s11, 1
        %s122 = smul.u32 6, %s16
        %p123 = scmp.lt.s32.totalorder %s122, 11
        %s124 = scalar_select %p123, %s122, 11
        %s125 = smul.addr %s124, 8
        %s126 = scalar_lea.vmem %s0, %s125
        %p127 = pneg %p37
        %p128 = pneg %p34
        %p129 = pneg %p58
        %p130 = pneg %p55
        %p131 = pneg %p84
        %p132 = pneg %p81
        %s133 = sand.u32 %s71, 1
        %s134 = scalar_lea.sflag [#allocation3], %s133
        %s135 = sand.u32 %s71, 1
        %s136 = smul.addr %s135, 48
        %s137 = scalar_lea.vmem [#allocation2], %s136
        %s138 = smul.u32 6, %s16
        %p139 = scmp.lt.s32.totalorder %s138, 11
        %s140 = scalar_select %p139, %s138, 11
        %s141 = smul.addr %s140, 8
        %s142 = scalar_lea.vmem %s0, %s141
        %s143 = smul.u32 6, %s16
        %s144 = smul.u32 6, %s16
        %v146 = vld [vmem:[%s142] sm:$0xff]
        %v147 = vld [vmem:[%s142 + $0x8] sm:$0xff]
        %v148 = vld [vmem:[%s142 + $0x10] sm:$0xff]
        %v149 = vld [vmem:[%s142 + $0x18] sm:$0xff]
        %v150 = vld [vmem:[%s142 + $0x20] sm:$0xff]
        %v151 = vld [vmem:[%s142 + $0x28] sm:$0xff]
        %v152 = vlaneseq
        %v153 = vand.u32 %v152, 127
        %154 = vset.pattern.permute.xlu0 0
        %155 = vperm.xlu0 %154, %v146
        %v156 = vpop.permute.xlu0 %155
        %157 = vset.pattern.permute.xlu0 0
        %158 = vperm.xlu0 %157, %v147
        %v159 = vpop.permute.xlu0 %158
        %160 = vset.pattern.permute.xlu0 0
        %161 = vperm.xlu0 %160, %v148
        %v162 = vpop.permute.xlu0 %161
        %163 = vset.pattern.permute.xlu0 0
        %164 = vperm.xlu0 %163, %v149
        %v165 = vpop.permute.xlu0 %164
        %166 = vset.pattern.permute.xlu0 0
        %167 = vperm.xlu0 %166, %v150
        %v168 = vpop.permute.xlu0 %167
        %169 = vset.pattern.permute.xlu0 0
        %170 = vperm.xlu0 %169, %v151
        %v171 = vpop.permute.xlu0 %170
        %vm172 = vcmp.eq.s32.totalorder %v153, %v156
        %vm173 = vcmp.eq.s32.totalorder %v153, %v159
        %vm174 = vcmp.eq.s32.totalorder %v153, %v162
        %vm175 = vcmp.eq.s32.totalorder %v153, %v165
        %vm176 = vcmp.eq.s32.totalorder %v153, %v168
        %vm177 = vcmp.eq.s32.totalorder %v153, %v171
        %v178 = vadd.s32 %v146, 5
        %v179 = vadd.s32 %v147, 5
        %v180 = vadd.s32 %v148, 5
        %v181 = vadd.s32 %v149, 5
        %v182 = vadd.s32 %v150, 5
        %v183 = vadd.s32 %v151, 5
        %184 = vset.pattern.permute.xlu0 1
        %185 = vperm.xlu0 %184, %v178
        %v186 = vpop.permute.xlu0 %185
        %187 = vset.pattern.permute.xlu0 1
        %188 = vperm.xlu0 %187, %v179
        %v189 = vpop.permute.xlu0 %188
        %190 = vset.pattern.permute.xlu0 1
        %191 = vperm.xlu0 %190, %v180
        %v192 = vpop.permute.xlu0 %191
        %193 = vset.pattern.permute.xlu0 1
        %194 = vperm.xlu0 %193, %v181
        %v195 = vpop.permute.xlu0 %194
        %196 = vset.pattern.permute.xlu0 1
        %197 = vperm.xlu0 %196, %v182
        %v198 = vpop.permute.xlu0 %197
        %199 = vset.pattern.permute.xlu0 1
        %200 = vperm.xlu0 %199, %v183
        %v201 = vpop.permute.xlu0 %200
        %vm202 = vcmp.eq.s32.totalorder %v153, %v186
        %vm203 = vcmp.eq.s32.totalorder %v153, %v189
        %vm204 = vcmp.eq.s32.totalorder %v153, %v192
        %vm205 = vcmp.eq.s32.totalorder %v153, %v195
        %vm206 = vcmp.eq.s32.totalorder %v153, %v198
        %vm207 = vcmp.eq.s32.totalorder %v153, %v201
        %vm208 = vmor %vm172, %vm202
        %vm209 = vmor %vm173, %vm203
        %vm210 = vmor %vm174, %vm204
        %vm211 = vmor %vm175, %vm205
        %vm212 = vmor %vm176, %vm206
        %vm213 = vmor %vm177, %vm207
        %v214 = vadd.s32 %v146, 11
        %v215 = vadd.s32 %v147, 11
        %v216 = vadd.s32 %v148, 11
        %v217 = vadd.s32 %v149, 11
        %v218 = vadd.s32 %v150, 11
        %v219 = vadd.s32 %v151, 11
        %220 = vset.pattern.permute.xlu0 2
        %221 = vperm.xlu0 %220, %v214
        %v222 = vpop.permute.xlu0 %221
        %223 = vset.pattern.permute.xlu0 2
        %224 = vperm.xlu0 %223, %v215
        %v225 = vpop.permute.xlu0 %224
        %226 = vset.pattern.permute.xlu0 2
        %227 = vperm.xlu0 %226, %v216
        %v228 = vpop.permute.xlu0 %227
        %229 = vset.pattern.permute.xlu0 2
        %230 = vperm.xlu0 %229, %v217
        %v231 = vpop.permute.xlu0 %230
        %232 = vset.pattern.permute.xlu0 2
        %233 = vperm.xlu0 %232, %v218
        %v234 = vpop.permute.xlu0 %233
        %235 = vset.pattern.permute.xlu0 2
        %236 = vperm.xlu0 %235, %v219
        %v237 = vpop.permute.xlu0 %236
        %vm238 = vcmp.eq.s32.totalorder %v153, %v222
        %vm239 = vcmp.eq.s32.totalorder %v153, %v225
        %vm240 = vcmp.eq.s32.totalorder %v153, %v228
        %vm241 = vcmp.eq.s32.totalorder %v153, %v231
        %vm242 = vcmp.eq.s32.totalorder %v153, %v234
        %vm243 = vcmp.eq.s32.totalorder %v153, %v237
        %vm244 = vmor %vm208, %vm238
        %vm245 = vmor %vm209, %vm239
        %vm246 = vmor %vm210, %vm240
        %vm247 = vmor %vm211, %vm241
        %vm248 = vmor %vm212, %vm242
        %vm249 = vmor %vm213, %vm243
        %v250 = vadd.s32 %v146, 32
        %v251 = vadd.s32 %v147, 32
        %v252 = vadd.s32 %v148, 32
        %v253 = vadd.s32 %v149, 32
        %v254 = vadd.s32 %v150, 32
        %v255 = vadd.s32 %v151, 32
        %256 = vset.pattern.permute.xlu0 3
        %257 = vperm.xlu0 %256, %v250
        %v258 = vpop.permute.xlu0 %257
        %259 = vset.pattern.permute.xlu0 3
        %260 = vperm.xlu0 %259, %v251
        %v261 = vpop.permute.xlu0 %260
        %262 = vset.pattern.permute.xlu0 3
        %263 = vperm.xlu0 %262, %v252
        %v264 = vpop.permute.xlu0 %263
        %265 = vset.pattern.permute.xlu0 3
        %266 = vperm.xlu0 %265, %v253
        %v267 = vpop.permute.xlu0 %266
        %268 = vset.pattern.permute.xlu0 3
        %269 = vperm.xlu0 %268, %v254
        %v270 = vpop.permute.xlu0 %269
        %271 = vset.pattern.permute.xlu0 3
        %272 = vperm.xlu0 %271, %v255
        %v273 = vpop.permute.xlu0 %272
        %vm274 = vcmp.eq.s32.totalorder %v153, %v258
        %vm275 = vcmp.eq.s32.totalorder %v153, %v261
        %vm276 = vcmp.eq.s32.totalorder %v153, %v264
        %vm277 = vcmp.eq.s32.totalorder %v153, %v267
        %vm278 = vcmp.eq.s32.totalorder %v153, %v270
        %vm279 = vcmp.eq.s32.totalorder %v153, %v273
        %vm280 = vmor %vm244, %vm274
        %vm281 = vmor %vm245, %vm275
        %vm282 = vmor %vm246, %vm276
        %vm283 = vmor %vm247, %vm277
        %vm284 = vmor %vm248, %vm278
        %vm285 = vmor %vm249, %vm279
        %v286 = vadd.s32 %v146, 37
        %v287 = vadd.s32 %v147, 37
        %v288 = vadd.s32 %v148, 37
        %v289 = vadd.s32 %v149, 37
        %v290 = vadd.s32 %v150, 37
        %v291 = vadd.s32 %v151, 37
        %292 = vset.pattern.permute.xlu0 4
        %293 = vperm.xlu0 %292, %v286
        %v294 = vpop.permute.xlu0 %293
        %295 = vset.pattern.permute.xlu0 4
        %296 = vperm.xlu0 %295, %v287
        %v297 = vpop.permute.xlu0 %296
        %298 = vset.pattern.permute.xlu0 4
        %299 = vperm.xlu0 %298, %v288
        %v300 = vpop.permute.xlu0 %299
        %301 = vset.pattern.permute.xlu0 4
        %302 = vperm.xlu0 %301, %v289
        %v303 = vpop.permute.xlu0 %302
        %304 = vset.pattern.permute.xlu0 4
        %305 = vperm.xlu0 %304, %v290
        %v306 = vpop.permute.xlu0 %305
        %307 = vset.pattern.permute.xlu0 4
        %308 = vperm.xlu0 %307, %v291
        %v309 = vpop.permute.xlu0 %308
        %vm310 = vcmp.eq.s32.totalorder %v153, %v294
        %vm311 = vcmp.eq.s32.totalorder %v153, %v297
        %vm312 = vcmp.eq.s32.totalorder %v153, %v300
        %vm313 = vcmp.eq.s32.totalorder %v153, %v303
        %vm314 = vcmp.eq.s32.totalorder %v153, %v306
        %vm315 = vcmp.eq.s32.totalorder %v153, %v309
        %vm316 = vmor %vm280, %vm310
        %vm317 = vmor %vm281, %vm311
        %vm318 = vmor %vm282, %vm312
        %vm319 = vmor %vm283, %vm313
        %vm320 = vmor %vm284, %vm314
        %vm321 = vmor %vm285, %vm315
        %v322 = vadd.s32 %v146, 43
        %v323 = vadd.s32 %v147, 43
        %v324 = vadd.s32 %v148, 43
        %v325 = vadd.s32 %v149, 43
        %v326 = vadd.s32 %v150, 43
        %v327 = vadd.s32 %v151, 43
        %328 = vset.pattern.permute.xlu0 5
        %329 = vperm.xlu0 %328, %v322
        %v330 = vpop.permute.xlu0 %329
        %331 = vset.pattern.permute.xlu0 5
        %332 = vperm.xlu0 %331, %v323
        %v333 = vpop.permute.xlu0 %332
        %334 = vset.pattern.permute.xlu0 5
        %335 = vperm.xlu0 %334, %v324
        %v336 = vpop.permute.xlu0 %335
        %337 = vset.pattern.permute.xlu0 5
        %338 = vperm.xlu0 %337, %v325
        %v339 = vpop.permute.xlu0 %338
        %340 = vset.pattern.permute.xlu0 5
        %341 = vperm.xlu0 %340, %v326
        %v342 = vpop.permute.xlu0 %341
        %343 = vset.pattern.permute.xlu0 5
        %344 = vperm.xlu0 %343, %v327
        %v345 = vpop.permute.xlu0 %344
        %vm346 = vcmp.eq.s32.totalorder %v153, %v330
        %vm347 = vcmp.eq.s32.totalorder %v153, %v333
        %vm348 = vcmp.eq.s32.totalorder %v153, %v336
        %vm349 = vcmp.eq.s32.totalorder %v153, %v339
        %vm350 = vcmp.eq.s32.totalorder %v153, %v342
        %vm351 = vcmp.eq.s32.totalorder %v153, %v345
        %vm352 = vmor %vm316, %vm346
        %vm353 = vmor %vm317, %vm347
        %vm354 = vmor %vm318, %vm348
        %vm355 = vmor %vm319, %vm349
        %vm356 = vmor %vm320, %vm350
        %vm357 = vmor %vm321, %vm351
        %v358 = vadd.s32 %v146, 64
        %v359 = vadd.s32 %v147, 64
        %v360 = vadd.s32 %v148, 64
        %v361 = vadd.s32 %v149, 64
        %v362 = vadd.s32 %v150, 64
        %v363 = vadd.s32 %v151, 64
        %364 = vset.pattern.permute.xlu0 6
        %365 = vperm.xlu0 %364, %v358
        %v366 = vpop.permute.xlu0 %365
        %367 = vset.pattern.permute.xlu0 6
        %368 = vperm.xlu0 %367, %v359
        %v369 = vpop.permute.xlu0 %368
        %370 = vset.pattern.permute.xlu0 6
        %371 = vperm.xlu0 %370, %v360
        %v372 = vpop.permute.xlu0 %371
        %373 = vset.pattern.permute.xlu0 6
        %374 = vperm.xlu0 %373, %v361
        %v375 = vpop.permute.xlu0 %374
        %376 = vset.pattern.permute.xlu0 6
        %377 = vperm.xlu0 %376, %v362
        %v378 = vpop.permute.xlu0 %377
        %379 = vset.pattern.permute.xlu0 6
        %380 = vperm.xlu0 %379, %v363
        %v381 = vpop.permute.xlu0 %380
        %vm382 = vcmp.eq.s32.totalorder %v153, %v366
        %vm383 = vcmp.eq.s32.totalorder %v153, %v369
        %vm384 = vcmp.eq.s32.totalorder %v153, %v372
        %vm385 = vcmp.eq.s32.totalorder %v153, %v375
        %vm386 = vcmp.eq.s32.totalorder %v153, %v378
        %vm387 = vcmp.eq.s32.totalorder %v153, %v381
        %vm388 = vmor %vm352, %vm382
        %vm389 = vmor %vm353, %vm383
        %vm390 = vmor %vm354, %vm384
        %vm391 = vmor %vm355, %vm385
        %vm392 = vmor %vm356, %vm386
        %vm393 = vmor %vm357, %vm387
        %v394 = vadd.s32 %v146, 69
        %v395 = vadd.s32 %v147, 69
        %v396 = vadd.s32 %v148, 69
        %v397 = vadd.s32 %v149, 69
        %v398 = vadd.s32 %v150, 69
        %v399 = vadd.s32 %v151, 69
        %400 = vset.pattern.permute.xlu0 7
        %401 = vperm.xlu0 %400, %v394
        %v402 = vpop.permute.xlu0 %401
        %403 = vset.pattern.permute.xlu0 7
        %404 = vperm.xlu0 %403, %v395
        %v405 = vpop.permute.xlu0 %404
        %406 = vset.pattern.permute.xlu0 7
        %407 = vperm.xlu0 %406, %v396
        %v408 = vpop.permute.xlu0 %407
        %409 = vset.pattern.permute.xlu0 7
        %410 = vperm.xlu0 %409, %v397
        %v411 = vpop.permute.xlu0 %410
        %412 = vset.pattern.permute.xlu0 7
        %413 = vperm.xlu0 %412, %v398
        %v414 = vpop.permute.xlu0 %413
        %415 = vset.pattern.permute.xlu0 7
        %416 = vperm.xlu0 %415, %v399
        %v417 = vpop.permute.xlu0 %416
        %vm418 = vcmp.eq.s32.totalorder %v153, %v402
        %vm419 = vcmp.eq.s32.totalorder %v153, %v405
        %vm420 = vcmp.eq.s32.totalorder %v153, %v408
        %vm421 = vcmp.eq.s32.totalorder %v153, %v411
        %vm422 = vcmp.eq.s32.totalorder %v153, %v414
        %vm423 = vcmp.eq.s32.totalorder %v153, %v417
        %vm424 = vmor %vm388, %vm418
        %vm425 = vmor %vm389, %vm419
        %vm426 = vmor %vm390, %vm420
        %vm427 = vmor %vm391, %vm421
        %vm428 = vmor %vm392, %vm422
        %vm429 = vmor %vm393, %vm423
        %v430 = vadd.s32 %v146, 75
        %v431 = vadd.s32 %v147, 75
        %v432 = vadd.s32 %v148, 75
        %v433 = vadd.s32 %v149, 75
        %v434 = vadd.s32 %v150, 75
        %v435 = vadd.s32 %v151, 75
        %436 = vset.pattern.permute.xlu0 8
        %437 = vperm.xlu0 %436, %v430
        %v438 = vpop.permute.xlu0 %437
        %439 = vset.pattern.permute.xlu0 8
        %440 = vperm.xlu0 %439, %v431
        %v441 = vpop.permute.xlu0 %440
        %442 = vset.pattern.permute.xlu0 8
        %443 = vperm.xlu0 %442, %v432
        %v444 = vpop.permute.xlu0 %443
        %445 = vset.pattern.permute.xlu0 8
        %446 = vperm.xlu0 %445, %v433
        %v447 = vpop.permute.xlu0 %446
        %448 = vset.pattern.permute.xlu0 8
        %449 = vperm.xlu0 %448, %v434
        %v450 = vpop.permute.xlu0 %449
        %451 = vset.pattern.permute.xlu0 8
        %452 = vperm.xlu0 %451, %v435
        %v453 = vpop.permute.xlu0 %452
        %vm454 = vcmp.eq.s32.totalorder %v153, %v438
        %vm455 = vcmp.eq.s32.totalorder %v153, %v441
        %vm456 = vcmp.eq.s32.totalorder %v153, %v444
        %vm457 = vcmp.eq.s32.totalorder %v153, %v447
        %vm458 = vcmp.eq.s32.totalorder %v153, %v450
        %vm459 = vcmp.eq.s32.totalorder %v153, %v453
        %vm460 = vmor %vm424, %vm454
        %vm461 = vmor %vm425, %vm455
        %vm462 = vmor %vm426, %vm456
        %vm463 = vmor %vm427, %vm457
        %vm464 = vmor %vm428, %vm458
        %vm465 = vmor %vm429, %vm459
        %v466 = vadd.s32 %v146, 96
        %v467 = vadd.s32 %v147, 96
        %v468 = vadd.s32 %v148, 96
        %v469 = vadd.s32 %v149, 96
        %v470 = vadd.s32 %v150, 96
        %v471 = vadd.s32 %v151, 96
        %472 = vset.pattern.permute.xlu0 9
        %473 = vperm.xlu0 %472, %v466
        %v474 = vpop.permute.xlu0 %473
        %475 = vset.pattern.permute.xlu0 9
        %476 = vperm.xlu0 %475, %v467
        %v477 = vpop.permute.xlu0 %476
        %478 = vset.pattern.permute.xlu0 9
        %479 = vperm.xlu0 %478, %v468
        %v480 = vpop.permute.xlu0 %479
        %481 = vset.pattern.permute.xlu0 9
        %482 = vperm.xlu0 %481, %v469
        %v483 = vpop.permute.xlu0 %482
        %484 = vset.pattern.permute.xlu0 9
        %485 = vperm.xlu0 %484, %v470
        %v486 = vpop.permute.xlu0 %485
        %487 = vset.pattern.permute.xlu0 9
        %488 = vperm.xlu0 %487, %v471
        %v489 = vpop.permute.xlu0 %488
        %vm490 = vcmp.eq.s32.totalorder %v153, %v474
        %vm491 = vcmp.eq.s32.totalorder %v153, %v477
        %vm492 = vcmp.eq.s32.totalorder %v153, %v480
        %vm493 = vcmp.eq.s32.totalorder %v153, %v483
        %vm494 = vcmp.eq.s32.totalorder %v153, %v486
        %vm495 = vcmp.eq.s32.totalorder %v153, %v489
        %vm496 = vmor %vm460, %vm490
        %vm497 = vmor %vm461, %vm491
        %vm498 = vmor %vm462, %vm492
        %vm499 = vmor %vm463, %vm493
        %vm500 = vmor %vm464, %vm494
        %vm501 = vmor %vm465, %vm495
        %v502 = vadd.s32 %v146, 101
        %v503 = vadd.s32 %v147, 101
        %v504 = vadd.s32 %v148, 101
        %v505 = vadd.s32 %v149, 101
        %v506 = vadd.s32 %v150, 101
        %v507 = vadd.s32 %v151, 101
        %508 = vset.pattern.permute.xlu0 10
        %509 = vperm.xlu0 %508, %v502
        %v510 = vpop.permute.xlu0 %509
        %511 = vset.pattern.permute.xlu0 10
        %512 = vperm.xlu0 %511, %v503
        %v513 = vpop.permute.xlu0 %512
        %514 = vset.pattern.permute.xlu0 10
        %515 = vperm.xlu0 %514, %v504
        %v516 = vpop.permute.xlu0 %515
        %517 = vset.pattern.permute.xlu0 10
        %518 = vperm.xlu0 %517, %v505
        %v519 = vpop.permute.xlu0 %518
        %520 = vset.pattern.permute.xlu0 10
        %521 = vperm.xlu0 %520, %v506
        %v522 = vpop.permute.xlu0 %521
        %523 = vset.pattern.permute.xlu0 10
        %524 = vperm.xlu0 %523, %v507
        %v525 = vpop.permute.xlu0 %524
        %vm526 = vcmp.eq.s32.totalorder %v153, %v510
        %vm527 = vcmp.eq.s32.totalorder %v153, %v513
        %vm528 = vcmp.eq.s32.totalorder %v153, %v516
        %vm529 = vcmp.eq.s32.totalorder %v153, %v519
        %vm530 = vcmp.eq.s32.totalorder %v153, %v522
        %vm531 = vcmp.eq.s32.totalorder %v153, %v525
        %vm532 = vmor %vm496, %vm526
        %vm533 = vmor %vm497, %vm527
        %vm534 = vmor %vm498, %vm528
        %vm535 = vmor %vm499, %vm529
        %vm536 = vmor %vm500, %vm530
        %vm537 = vmor %vm501, %vm531
        %v538 = vadd.s32 %v146, 107
        %v539 = vadd.s32 %v147, 107
        %v540 = vadd.s32 %v148, 107
        %v541 = vadd.s32 %v149, 107
        %v542 = vadd.s32 %v150, 107
        %v543 = vadd.s32 %v151, 107
        %544 = vset.pattern.permute.xlu0 11
        %545 = vperm.xlu0 %544, %v538
        %v546 = vpop.permute.xlu0 %545
        %547 = vset.pattern.permute.xlu0 11
        %548 = vperm.xlu0 %547, %v539
        %v549 = vpop.permute.xlu0 %548
        %550 = vset.pattern.permute.xlu0 11
        %551 = vperm.xlu0 %550, %v540
        %v552 = vpop.permute.xlu0 %551
        %553 = vset.pattern.permute.xlu0 11
        %554 = vperm.xlu0 %553, %v541
        %v555 = vpop.permute.xlu0 %554
        %556 = vset.pattern.permute.xlu0 11
        %557 = vperm.xlu0 %556, %v542
        %v558 = vpop.permute.xlu0 %557
        %559 = vset.pattern.permute.xlu0 11
        %560 = vperm.xlu0 %559, %v543
        %v561 = vpop.permute.xlu0 %560
        %vm562 = vcmp.eq.s32.totalorder %v153, %v546
        %vm563 = vcmp.eq.s32.totalorder %v153, %v549
        %vm564 = vcmp.eq.s32.totalorder %v153, %v552
        %vm565 = vcmp.eq.s32.totalorder %v153, %v555
        %vm566 = vcmp.eq.s32.totalorder %v153, %v558
        %vm567 = vcmp.eq.s32.totalorder %v153, %v561
        %vm568 = vmor %vm532, %vm562
        %vm569 = vmor %vm533, %vm563
        %vm570 = vmor %vm534, %vm564
        %vm571 = vmor %vm535, %vm565
        %vm572 = vmor %vm536, %vm566
        %vm573 = vmor %vm537, %vm567
        %v574 = vsel %vm568, 1, 0
        %v575 = vsel %vm569, 1, 0
        %v576 = vsel %vm570, 1, 0
        %v577 = vsel %vm571, 1, 0
        %v578 = vsel %vm572, 1, 0
        %v579 = vsel %vm573, 1, 0
        %v580 = vcvt.s32.f32 %v574
        %v581 = vcvt.s32.f32 %v575
        %v582 = vcvt.s32.f32 %v576
        %v583 = vcvt.s32.f32 %v577
        %v584 = vcvt.s32.f32 %v578
        %v585 = vcvt.s32.f32 %v579
        %v586 = vpack.c.bf16 %v581, %v580
        %v587 = vpack.c.bf16 %v583, %v582
        %v588 = vpack.c.bf16 %v585, %v584
        %v589 = vld [vmem:[%s1] sm:$0xf]
        %v590 = vld [vmem:[%s1 + $0x4] sm:$0xf]
        %v591 = vld [vmem:[%s1 + $0x8] sm:$0xf]
        %v592 = vld [vmem:[%s1 + $0xc] sm:$0xf]
        %v593 = vld [vmem:[%s1 + $0x10] sm:$0xf]
        %v594 = vld [vmem:[%s1 + $0x14] sm:$0xf]
        %v595 = vld [vmem:[%s1 + $0x18] sm:$0xf]
        %v596 = vld [vmem:[%s1 + $0x1c] sm:$0xf]
        %v597 = vld [vmem:[%s1 + $0x20] sm:$0xf]
        %v598 = vld [vmem:[%s1 + $0x24] sm:$0xf]
        %v599 = vld [vmem:[%s1 + $0x28] sm:$0xf]
        %v600 = vld [vmem:[%s1 + $0x2c] sm:$0xf]
        %v601 = vld [vmem:[%s1 + $0x30] sm:$0xf]
        %v602 = vld [vmem:[%s1 + $0x34] sm:$0xf]
        %v603 = vld [vmem:[%s1 + $0x38] sm:$0xf]
        %v604 = vld [vmem:[%s1 + $0x3c] sm:$0xf]
        %v621 = vunpack.c.l.b16 %v589
        %v622 = vunpack.c.l.b16 %v590
        %v623 = vunpack.c.l.b16 %v591
        %v624 = vunpack.c.l.b16 %v592
        %v625 = vunpack.c.l.b16 %v593
        %v626 = vunpack.c.l.b16 %v594
        %v627 = vunpack.c.l.b16 %v595
        %v628 = vunpack.c.l.b16 %v596
        %v629 = vunpack.c.l.b16 %v597
        %v630 = vunpack.c.l.b16 %v598
        %v631 = vunpack.c.l.b16 %v599
        %v632 = vunpack.c.l.b16 %v600
        %v633 = vunpack.c.l.b16 %v601
        %v634 = vunpack.c.l.b16 %v602
        %v635 = vunpack.c.l.b16 %v603
        %v636 = vunpack.c.l.b16 %v604
        %v637 = vpack.c.b16 %v622, %v621
        %v638 = vpack.c.b16 %v624, %v623
        %v639 = vpack.c.b16 %v626, %v625
        %v640 = vpack.c.b16 %v628, %v627
        %v641 = vpack.c.b16 %v630, %v629
        %v642 = vpack.c.b16 %v632, %v631
        %v643 = vpack.c.b16 %v634, %v633
        %v644 = vpack.c.b16 %v636, %v635
        %653 = vmatprep.subr.bf16.mxu0 0
        %654 = vmatpush1.bf16.msra.mxu0 %v637
        %655 = vmatprep.subr.bf16.mxu0 0
        %656 = vmatpush1.bf16.msra.mxu0 %v638
        %657 = vmatprep.subr.bf16.mxu0 0
        %658 = vmatpush1.bf16.msra.mxu0 %v639
        %659 = vmatprep.subr.bf16.mxu0 0
        %660 = vmatpush1.bf16.msra.mxu0 %v640
        %661 = vmatprep.subr.bf16.mxu0 0
        %662 = vmatpush1.bf16.msra.mxu0 %v641
        %663 = vmatprep.subr.bf16.mxu0 0
        %664 = vmatpush1.bf16.msra.mxu0 %v642
        %665 = vmatprep.subr.bf16.mxu0 0
        %666 = vmatpush1.bf16.msra.mxu0 %v643
        %667 = vmatprep.subr.bf16.mxu0 0
        %668 = vmatpush1.bf16.msra.mxu0 %v644
        %669 = vmatprep.subr.bf16.mxu0 0
        %670 = vmatpush1.bf16.msra.mxu0 0
        %671 = vmatprep.subr.bf16.mxu0 0
        %672 = vmatpush1.bf16.msra.mxu0 0
        %673 = vmatprep.subr.bf16.mxu0 0
        %674 = vmatpush1.bf16.msra.mxu0 0
        %675 = vmatprep.subr.bf16.mxu0 0
        %676 = vmatpush1.bf16.msra.mxu0 0
        %677 = vmatprep.subr.bf16.mxu0 0
        %678 = vmatpush1.bf16.msra.mxu0 0
        %679 = vmatprep.subr.bf16.mxu0 0
        %680 = vmatpush1.bf16.msra.mxu0 0
        %681 = vmatprep.subr.bf16.mxu0 0
        %682 = vmatpush1.bf16.msra.mxu0 0
        %683 = vmatprep.subr.bf16.mxu0 0
        %684 = vmatpush1.bf16.msra.mxu0 0
        %685 = vmatprep.mubr.bf16.mxu0 0
        %686 = vmatmul.mubr.bf16.gmra.mrb[0].mxu0 %v586
        %v687 = vpop.f32.mrb[0].mxu0
        %v688 = vadd.f32 0.0, %v687
        %v689 = vpop.f32.mrb[0].mxu0
        %v690 = vpop.f32.mrb[0].mxu0
        %v691 = vadd.f32 0.0, %v690
        %v692 = vpop.f32.mrb[0].mxu0
        %693 = vmatprep.mubr.bf16.mxu0 0
        %694 = vmatmul.mubr.bf16.gmra.mrb[0].mxu0 %v587
        %v695 = vpop.f32.mrb[0].mxu0
        %v696 = vadd.f32 0.0, %v695
        %v697 = vpop.f32.mrb[0].mxu0
        %v698 = vpop.f32.mrb[0].mxu0
        %v699 = vadd.f32 0.0, %v698
        %v700 = vpop.f32.mrb[0].mxu0
        %701 = vmatprep.mubr.bf16.mxu0 0
        %702 = vmatmul.mubr.bf16.gmra.mrb[0].mxu0 %v588
        %v703 = vpop.f32.mrb[0].mxu0
        %v704 = vadd.f32 0.0, %v703
        %v705 = vpop.f32.mrb[0].mxu0
        %v706 = vpop.f32.mrb[0].mxu0
        %v707 = vadd.f32 0.0, %v706
        %v708 = vpop.f32.mrb[0].mxu0
        %709 = vdwg.mxu0
        %710 = vst [vmem:[%s137] sm:$0xff] %v688
        %711 = vst [vmem:[%s137 + $0x8] sm:$0xff] %v691
        %712 = vst [vmem:[%s137 + $0x10] sm:$0xff] %v696
        %713 = vst [vmem:[%s137 + $0x18] sm:$0xff] %v699
        %714 = vst [vmem:[%s137 + $0x20] sm:$0xff] %v704
        %715 = vst [vmem:[%s137 + $0x28] sm:$0xff] %v707
        %s716 = sand.u32 %s71, 1
        %s717 = scalar_lea.sflag [#allocation3], %s716
        %s718 = sand.u32 %s71, 1
        %s719 = smul.addr %s718, 48
        %s720 = scalar_lea.vmem [#allocation2], %s719
        // Predicated region
        $region29: #{tpu_custom_call.1} parent=27 // pred_check
          %p721 = pneg %p81
        $region30: #{tpu_custom_call.1} parent=27 // pred_check_branch
          %723 = sbr.rel (%p721) target = $region32
        $region31: #{tpu_custom_call.1} parent=27 // pred_region
          %s724 = smul.u32 6, %s16
          %s726 = ssub.s32 768, 768
          %727 = vsyncadd %s717, %s726
          %s728 = smul.addr %s724, 128
          %s729 = scalar_lea.hbm %s2, %s728
          %s730 = sshll.u32 %s720, 4
          %s731 = int_to_ptr.vmem [resolvable:$true] %s730
          %736 = dma.vmem_to_hbm [thread:$0]  %s731, 768, %s729, %s717, 128, 128, 8
        $region32: #{tpu_custom_call.1} parent=27 // pred_fallthru
          _
      $region28: #{tpu_custom_call.1} parent=5 // pred_fallthru
        _
      %p737 = scmp.le.s32.totalorder 2, %s11
      // Predicated region
      $region33: #{tpu_custom_call.1} parent=5 // pred_check
        %p738 = pneg %p737
      $region34: #{tpu_custom_call.1} parent=5 // pred_check_branch
        %740 = sbr.rel (%p738) target = $region36
      $region35: #{tpu_custom_call.1} parent=5 // pred_region
        %s741 = ssub.s32 %s11, 2
        // Predicated region
        $region37: #{tpu_custom_call.1} parent=35 // pred_check
          %p742 = pneg %p87
        $region38: #{tpu_custom_call.1} parent=35 // pred_check_branch
          %744 = sbr.rel (%p742) target = $region40
        $region39: #{tpu_custom_call.1} parent=35 // pred_region
          %s745 = sand.u32 %s72, 1
          %s746 = scalar_lea.sflag [#allocation3], %s745
          %s747 = sand.u32 %s72, 1
          %s748 = smul.addr %s747, 48
          %s749 = scalar_lea.vmem [#allocation2], %s748
          %750 = dma.done %s746, 768
        $region40: #{tpu_custom_call.1} parent=35 // pred_fallthru
          _
      $region36: #{tpu_custom_call.1} parent=5 // pred_fallthru
        _
    $region6: #{tpu_custom_call.1} parent=1 // loop_footer
      %s15 = sadd.s32 1, %s11
    $region7: #{tpu_custom_call.1} parent=1 // loop_footer_branch
      %10 = sbr.rel target = $region3
    $region8: #{tpu_custom_call.1} parent=1 // loop_exit
      _
    %751 = vsyncpa [#allocation3], 1
    %s752 = scalar_lea.sflag [#allocation3], 1
    %753 = vsyncpa %s752, 1

</llo_original>
